<compile_context>
chip_gen: v7x
topology: tpu7x:2x2x1
jax: 0.10.0
libtpu: 0.0.40
codegen_flags: <defaults>
</compile_context>

<pallas_src>
import jax
import jax.numpy as jnp
from jax.experimental import pallas as pl
from jax.experimental.pallas import tpu as pltpu


# ----------------------------------------------------------------------------
# helpers
# ----------------------------------------------------------------------------
def _round_up(x, m):
    return ((x + m - 1) // m) * m


def _cdiv(a, b):
    return -(-a // b)


def _tpu_config():
    """Returns (tile_b_default, vmem_limit_bytes, mxu_contraction_granularity)."""
    vmem_cap = None
    try:
        vmem_cap = int(pltpu.get_tpu_info().vmem_capacity_bytes)
    except Exception:
        vmem_cap = None
    kind = ""
    try:
        kind = jax.devices()[0].device_kind.lower()
    except Exception:
        pass
    small_mxu = any(t in kind for t in ("v2", "v3", "v4", "v5"))  # 128x128 MXU
    is_v7 = ("7" in kind) or (vmem_cap is not None and vmem_cap <= 64 * 1024 * 1024)
    if is_v7:
        # 64 MiB physical per TC: leave headroom for Mosaic scratch / buffers.
        return 512, 48 * 1024 * 1024, 256
    # v5e / v6e: 128 MiB physical VMEM.
    return 1024, 96 * 1024 * 1024, (128 if small_mxu else 256)


def _pad_dim(d, mxu_gran):
    """MXU-aware feature padding: 128 for small dims, mxu_gran for large ones."""
    if d < 192 or mxu_gran <= 128:
        return _round_up(d, 128)
    return _round_up(d, mxu_gran)


def _choose_batch_tiling(B, tile_b_cap):
    """TILE_B multiple of 16 (bf16 sublanes); >=2 tiles for moderate batches
    so dimension_semantics=('parallel',) can actually shard across TCs."""
    b16 = _round_up(max(B, 1), 16)
    tile = min(tile_b_cap, b16)
    if _cdiv(b16, tile) < 2 and b16 >= 256:
        tile = _round_up(_cdiv(b16, 2), 16)
    b_pad = _round_up(B, tile)
    return tile, b_pad


# ----------------------------------------------------------------------------
# kernel
# ----------------------------------------------------------------------------
def mlp_kernel(x_ref, w1_ref, b1_ref, w2_ref, b2_ref, w3_ref, b3_ref, o_ref):
    # x arrives f32; cast to bf16 here (VPU filler, hidden under MXU/DMA).
    x_bf = x_ref[...].astype(jnp.bfloat16)

    # Layer 1: Linear (bf16 MXU, f32 accumulate) + bias + ReLU (f32 on VPU)
    h1 = jnp.dot(x_bf, w1_ref[...], preferred_element_type=jnp.float32)
    h1 = jnp.maximum(h1 + b1_ref[...], 0.0)

    # Layer 2: Linear + bias + ReLU
    h2 = jnp.dot(h1.astype(jnp.bfloat16), w2_ref[...],
                 preferred_element_type=jnp.float32)
    h2 = jnp.maximum(h2 + b2_ref[...], 0.0)

    # Layer 3: Linear (logits, no activation) -> lane-dense f32 store
    out = jnp.dot(h2.astype(jnp.bfloat16), w3_ref[...],
                  preferred_element_type=jnp.float32)
    o_ref[...] = (out + b3_ref[...]).astype(o_ref.dtype)


# ----------------------------------------------------------------------------
# one-time parameter preparation (hoisted out of the per-call path)
# ----------------------------------------------------------------------------
def prepare_params(params, *, mxu_gran=None):
    """Pad + bf16-cast the weights ONCE.  Weights stored (in_features,
    out_features) so y = x @ W + b matches PyTorch's Linear."""
    if mxu_gran is None:
        _, _, mxu_gran = _tpu_config()
    w1, b1, w2, b2, w3, b3 = params
    in_f, hid = w1.shape
    n_cls = w3.shape[1]

    H = _pad_dim(hid, mxu_gran)       # hidden: MXU-aware (contraction of L2/L3)
    C = _round_up(n_cls, 128)         # logits: lane-dense output only

    # Layer-1 contraction stays at the native in_f so x needs no feature pad.
    w1p = jnp.pad(w1, ((0, 0), (0, H - hid))).astype(jnp.bfloat16)
    w2p = jnp.pad(w2, ((0, H - hid), (0, H - hid))).astype(jnp.bfloat16)
    w3p = jnp.pad(w3, ((0, H - hid), (0, C - n_cls))).astype(jnp.bfloat16)
    b1p = jnp.pad(b1.reshape(1, -1), ((0, 0), (0, H - hid))).astype(jnp.float32)
    b2p = jnp.pad(b2.reshape(1, -1), ((0, 0), (0, H - hid))).astype(jnp.float32)
    b3p = jnp.pad(b3.reshape(1, -1), ((0, 0), (0, C - n_cls))).astype(jnp.float32)

    return dict(w1p=w1p, b1p=b1p, w2p=w2p, b2p=b2p, w3p=w3p, b3p=b3p,
                in_f=in_f, hid=hid, n_cls=n_cls, H=H, C=C)


# ----------------------------------------------------------------------------
# forward
# ----------------------------------------------------------------------------
def neural_net_forward(x, prepared, *, tile_b=None, vmem_limit_bytes=None):
    """x: (B, input_size) f32.  prepared: output of prepare_params()."""
    tile_b_default, vmem_default, _ = _tpu_config()
    if tile_b is None:
        tile_b = tile_b_default
    if vmem_limit_bytes is None:
        vmem_limit_bytes = vmem_default

    B, in_f = x.shape
    assert in_f == prepared["in_f"], "input feature size mismatch"
    H, C, n_cls = prepared["H"], prepared["C"], prepared["n_cls"]

    TILE_B, B_pad = _choose_batch_tiling(B, tile_b)

    xp = x.astype(jnp.float32)
    if B_pad != B:
        xp = jnp.pad(xp, ((0, B_pad - B), (0, 0)))   # batch pad only, no cast

    grid = (B_pad // TILE_B,)

    flops = 2 * B_pad * (in_f * H + H * H + H * C)
    bytes_accessed = (B_pad * in_f * 4 + B_pad * C * 4
                      + (prepared["w1p"].size + prepared["w2p"].size
                         + prepared["w3p"].size) * 2
                      + (prepared["b1p"].size + prepared["b2p"].size
                         + prepared["b3p"].size) * 4)
    cost = pl.CostEstimate(flops=flops, transcendentals=0,
                           bytes_accessed=bytes_accessed)

    def make_call(single_buffer):
        if single_buffer:
            # Constant index map => weights never re-DMA'd; single buffer
            # halves their VMEM footprint (matters for v7x / large hidden).
            def resident(shape):
                return pl.BlockSpec(shape, lambda i: (0, 0),
                                    pipeline_mode=pl.Buffered(1))
        else:
            def resident(shape):
                return pl.BlockSpec(shape, lambda i: (0, 0))
        return pl.pallas_call(
            mlp_kernel,
            out_shape=jax.ShapeDtypeStruct((B_pad, C), jnp.float32),
            grid=grid,
            in_specs=[
                pl.BlockSpec((TILE_B, in_f), lambda i: (i, 0)),  # x tile (pipelined)
                resident((in_f, H)), resident((1, H)),           # w1, b1
                resident((H, H)), resident((1, H)),              # w2, b2
                resident((H, C)), resident((1, C)),              # w3, b3
            ],
            out_specs=pl.BlockSpec((TILE_B, C), lambda i: (i, 0)),
            compiler_params=pltpu.CompilerParams(
                dimension_semantics=("parallel",),        # megacore batch split
                vmem_limit_bytes=vmem_limit_bytes,        # generation-aware
            ),
            cost_estimate=cost,
        )

    args = (xp, prepared["w1p"], prepared["b1p"], prepared["w2p"],
            prepared["b2p"], prepared["w3p"], prepared["b3p"])
    try:
        out_padded = make_call(single_buffer=True)(*args)
    except Exception:
        # pipeline_mode=pl.Buffered(1) unsupported on this jax build;
        # fall back to default (double-buffered) resident weights.
        out_padded = make_call(single_buffer=False)(*args)

    return out_padded[:B, :n_cls]


# ----------------------------------------------------------------------------
# PyTorch-Linear-style init (uniform(-k, k), k = 1/sqrt(fan_in))
# ----------------------------------------------------------------------------
def init_params(key, input_size, hidden_size, num_classes):
    ks = jax.random.split(key, 6)

    def linear(kw, kb, fan_in, fan_out):
        bound = 1.0 / jnp.sqrt(fan_in)
        w = jax.random.uniform(kw, (fan_in, fan_out), jnp.float32, -bound, bound)
        b = jax.random.uniform(kb, (1, fan_out), jnp.float32, -bound, bound)
        return w, b

    w1, b1 = linear(ks[0], ks[1], input_size, hidden_size)
    w2, b2 = linear(ks[2], ks[3], hidden_size, hidden_size)
    w3, b3 = linear(ks[4], ks[5], hidden_size, num_classes)
    return (w1, b1, w2, b2, w3, b3)


if __name__ == "__main__":
    # Small shapes consistent with the module's forward: x is (batch, input_size)
    batch = 8
    input_size = 32
    hidden_size = 32
    num_classes = 10

    key = jax.random.PRNGKey(0)
    k_x, k_p = jax.random.split(key)

    x = jax.random.normal(k_x, (batch, input_size), jnp.float32)
    params = init_params(k_p, input_size, hidden_size, num_classes)

    # One-time weight preparation (pad + bf16 cast) — NOT redone per forward.
    prepared = prepare_params(params)

    out = neural_net_forward(x, prepared)
    out = jax.block_until_ready(out)
    assert out.shape == (batch, num_classes)

    # Reference in plain JAX, emulating the same bf16-matmul / f32-accumulate path.
    w1, b1, w2, b2, w3, b3 = params
    xb = x.astype(jnp.bfloat16)
    h1 = jnp.maximum(
        jnp.dot(xb, w1.astype(jnp.bfloat16),
                preferred_element_type=jnp.float32) + b1, 0.0)
    h2 = jnp.maximum(
        jnp.dot(h1.astype(jnp.bfloat16), w2.astype(jnp.bfloat16),
                preferred_element_type=jnp.float32) + b2, 0.0)
    ref = jnp.dot(h2.astype(jnp.bfloat16), w3.astype(jnp.bfloat16),
                  preferred_element_type=jnp.float32) + b3

    assert jnp.allclose(out, ref, atol=2e-2, rtol=2e-2), (
        f"max abs err {jnp.max(jnp.abs(out - ref))}")

    print("KERNEL_OK")
</pallas_src>

<mosaic_0001>
module attributes {stable_mosaic.version = 11 : i64} {
  func.func @mlp_kernel(%arg0: i32, %arg1: memref<16x32xf32, #tpu.memory_space<vmem>>, %arg2: memref<32x128xbf16, #tpu.memory_space<vmem>>, %arg3: memref<1x128xf32, #tpu.memory_space<vmem>>, %arg4: memref<128x128xbf16, #tpu.memory_space<vmem>>, %arg5: memref<1x128xf32, #tpu.memory_space<vmem>>, %arg6: memref<128x128xbf16, #tpu.memory_space<vmem>>, %arg7: memref<1x128xf32, #tpu.memory_space<vmem>>, %arg8: memref<16x128xf32, #tpu.memory_space<vmem>>) attributes {dimension_semantics = [#tpu.dimension_semantics<parallel>], iteration_bounds = array<i64: 1>, scalar_prefetch = 0 : i64, scratch_operands = 0 : i64, tpu.core_type = #tpu.core_type<tc>, window_params = [{transform_indices = @transform_0, window_bounds = array<i64: 16, 32>}, {pipeline_mode = #tpu.pipeline_mode<synchronous>, transform_indices = @transform_1, window_bounds = array<i64: 32, 128>}, {pipeline_mode = #tpu.pipeline_mode<synchronous>, transform_indices = @transform_2, window_bounds = array<i64: 1, 128>}, {pipeline_mode = #tpu.pipeline_mode<synchronous>, transform_indices = @transform_3, window_bounds = array<i64: 128, 128>}, {pipeline_mode = #tpu.pipeline_mode<synchronous>, transform_indices = @transform_4, window_bounds = array<i64: 1, 128>}, {pipeline_mode = #tpu.pipeline_mode<synchronous>, transform_indices = @transform_5, window_bounds = array<i64: 128, 128>}, {pipeline_mode = #tpu.pipeline_mode<synchronous>, transform_indices = @transform_6, window_bounds = array<i64: 1, 128>}, {transform_indices = @transform_7, window_bounds = array<i64: 16, 128>}]} {
    %c0 = arith.constant 0 : index
    %c0_0 = arith.constant 0 : index
    %0 = vector.load %arg1[%c0, %c0_0] : memref<16x32xf32, #tpu.memory_space<vmem>>, vector<16x32xf32>
    %1 = arith.truncf %0 : vector<16x32xf32> to vector<16x32xbf16>
    %c0_1 = arith.constant 0 : index
    %c0_2 = arith.constant 0 : index
    %2 = vector.load %arg2[%c0_1, %c0_2] : memref<32x128xbf16, #tpu.memory_space<vmem>>, vector<32x128xbf16>
    %cst = arith.constant dense<0.000000e+00> : vector<16x128xf32>
    %3 = tpu.matmul %1, %2, %cst {dimension_numbers = #tpu.dot_dimension_numbers<[1], [0], [0], [1], [0, 0, 1, 1], [], []>} : vector<16x32xbf16>, vector<32x128xbf16>, vector<16x128xf32> -> vector<16x128xf32>
    %c0_3 = arith.constant 0 : index
    %c0_4 = arith.constant 0 : index
    %4 = vector.load %arg3[%c0_3, %c0_4] : memref<1x128xf32, #tpu.memory_space<vmem>>, vector<1x128xf32>
    %5 = vector.broadcast %4 : vector<1x128xf32> to vector<16x128xf32>
    %6 = arith.addf %3, %5 : vector<16x128xf32>
    %cst_5 = arith.constant 0.000000e+00 : f32
    %7 = vector.broadcast %cst_5 : f32 to vector<16x128xf32>
    %8 = arith.maximumf %6, %7 : vector<16x128xf32>
    %9 = arith.truncf %8 : vector<16x128xf32> to vector<16x128xbf16>
    %c0_6 = arith.constant 0 : index
    %c0_7 = arith.constant 0 : index
    %10 = vector.load %arg4[%c0_6, %c0_7] : memref<128x128xbf16, #tpu.memory_space<vmem>>, vector<128x128xbf16>
    %cst_8 = arith.constant dense<0.000000e+00> : vector<16x128xf32>
    %11 = tpu.matmul %9, %10, %cst_8 {dimension_numbers = #tpu.dot_dimension_numbers<[1], [0], [0], [1], [0, 0, 1, 1], [], []>} : vector<16x128xbf16>, vector<128x128xbf16>, vector<16x128xf32> -> vector<16x128xf32>
    %c0_9 = arith.constant 0 : index
    %c0_10 = arith.constant 0 : index
    %12 = vector.load %arg5[%c0_9, %c0_10] : memref<1x128xf32, #tpu.memory_space<vmem>>, vector<1x128xf32>
    %13 = vector.broadcast %12 : vector<1x128xf32> to vector<16x128xf32>
    %14 = arith.addf %11, %13 : vector<16x128xf32>
    %cst_11 = arith.constant 0.000000e+00 : f32
    %15 = vector.broadcast %cst_11 : f32 to vector<16x128xf32>
    %16 = arith.maximumf %14, %15 : vector<16x128xf32>
    %17 = arith.truncf %16 : vector<16x128xf32> to vector<16x128xbf16>
    %c0_12 = arith.constant 0 : index
    %c0_13 = arith.constant 0 : index
    %18 = vector.load %arg6[%c0_12, %c0_13] : memref<128x128xbf16, #tpu.memory_space<vmem>>, vector<128x128xbf16>
    %cst_14 = arith.constant dense<0.000000e+00> : vector<16x128xf32>
    %19 = tpu.matmul %17, %18, %cst_14 {dimension_numbers = #tpu.dot_dimension_numbers<[1], [0], [0], [1], [0, 0, 1, 1], [], []>} : vector<16x128xbf16>, vector<128x128xbf16>, vector<16x128xf32> -> vector<16x128xf32>
    %c0_15 = arith.constant 0 : index
    %c0_16 = arith.constant 0 : index
    %20 = vector.load %arg7[%c0_15, %c0_16] : memref<1x128xf32, #tpu.memory_space<vmem>>, vector<1x128xf32>
    %21 = vector.broadcast %20 : vector<1x128xf32> to vector<16x128xf32>
    %22 = arith.addf %19, %21 : vector<16x128xf32>
    %c0_17 = arith.constant 0 : index
    %c0_18 = arith.constant 0 : index
    %23 = vector.load %arg8[%c0_17, %c0_18] : memref<16x128xf32, #tpu.memory_space<vmem>>, vector<16x128xf32>
    tpu.vector_store %arg8[%c0_17, %c0_18], %22 {strides = array<i32>} : memref<16x128xf32, #tpu.memory_space<vmem>>, vector<16x128xf32>,
    return
  }
  func.func @transform_0(%arg0: i32) -> (i32, i32) {
    %c0_i32 = arith.constant 0 : i32
    %c0_i32_0 = arith.constant 0 : i32
    return %arg0, %c0_i32 : i32, i32
  }
  func.func @transform_1(%arg0: i32) -> (i32, i32) {
    %c0_i32 = arith.constant 0 : i32
    %c0_i32_0 = arith.constant 0 : i32
    %c0_i32_1 = arith.constant 0 : i32
    return %c0_i32, %c0_i32_0 : i32, i32
  }
  func.func @transform_2(%arg0: i32) -> (i32, i32) {
    %c0_i32 = arith.constant 0 : i32
    %c0_i32_0 = arith.constant 0 : i32
    %c0_i32_1 = arith.constant 0 : i32
    return %c0_i32, %c0_i32_0 : i32, i32
  }
  func.func @transform_3(%arg0: i32) -> (i32, i32) {
    %c0_i32 = arith.constant 0 : i32
    %c0_i32_0 = arith.constant 0 : i32
    %c0_i32_1 = arith.constant 0 : i32
    return %c0_i32, %c0_i32_0 : i32, i32
  }
  func.func @transform_4(%arg0: i32) -> (i32, i32) {
    %c0_i32 = arith.constant 0 : i32
    %c0_i32_0 = arith.constant 0 : i32
    %c0_i32_1 = arith.constant 0 : i32
    return %c0_i32, %c0_i32_0 : i32, i32
  }
  func.func @transform_5(%arg0: i32) -> (i32, i32) {
    %c0_i32 = arith.constant 0 : i32
    %c0_i32_0 = arith.constant 0 : i32
    %c0_i32_1 = arith.constant 0 : i32
    return %c0_i32, %c0_i32_0 : i32, i32
  }
  func.func @transform_6(%arg0: i32) -> (i32, i32) {
    %c0_i32 = arith.constant 0 : i32
    %c0_i32_0 = arith.constant 0 : i32
    %c0_i32_1 = arith.constant 0 : i32
    return %c0_i32, %c0_i32_0 : i32, i32
  }
  func.func @transform_7(%arg0: i32) -> (i32, i32) {
    %c0_i32 = arith.constant 0 : i32
    %c0_i32_0 = arith.constant 0 : i32
    return %arg0, %c0_i32 : i32, i32
  }
}

module attributes {stable_mosaic.version = 11 : i64} {
  func.func @mlp_kernel(%arg0: i32, %arg1: memref<16x32xf32, #tpu.memory_space<vmem>>, %arg2: memref<32x128xbf16, #tpu.memory_space<vmem>>, %arg3: memref<1x128xf32, #tpu.memory_space<vmem>>, %arg4: memref<128x128xbf16, #tpu.memory_space<vmem>>, %arg5: memref<1x128xf32, #tpu.memory_space<vmem>>, %arg6: memref<128x128xbf16, #tpu.memory_space<vmem>>, %arg7: memref<1x128xf32, #tpu.memory_space<vmem>>, %arg8: memref<16x128xf32, #tpu.memory_space<vmem>>) attributes {dimension_semantics = [#tpu.dimension_semantics<parallel>], iteration_bounds = array<i64: 1>, scalar_prefetch = 0 : i64, scratch_operands = 0 : i64, tpu.core_type = #tpu.core_type<tc>, window_params = [{transform_indices = @transform_0, window_bounds = array<i64: 16, 32>}, {pipeline_mode = #tpu.pipeline_mode<synchronous>, transform_indices = @transform_1, window_bounds = array<i64: 32, 128>}, {pipeline_mode = #tpu.pipeline_mode<synchronous>, transform_indices = @transform_2, window_bounds = array<i64: 1, 128>}, {pipeline_mode = #tpu.pipeline_mode<synchronous>, transform_indices = @transform_3, window_bounds = array<i64: 128, 128>}, {pipeline_mode = #tpu.pipeline_mode<synchronous>, transform_indices = @transform_4, window_bounds = array<i64: 1, 128>}, {pipeline_mode = #tpu.pipeline_mode<synchronous>, transform_indices = @transform_5, window_bounds = array<i64: 128, 128>}, {pipeline_mode = #tpu.pipeline_mode<synchronous>, transform_indices = @transform_6, window_bounds = array<i64: 1, 128>}, {transform_indices = @transform_7, window_bounds = array<i64: 16, 128>}]} {
    %c0 = arith.constant 0 : index
    %c0_0 = arith.constant 0 : index
    %0 = vector.load %arg1[%c0, %c0_0] : memref<16x32xf32, #tpu.memory_space<vmem>>, vector<16x32xf32>
    %1 = arith.truncf %0 : vector<16x32xf32> to vector<16x32xbf16>
    %c0_1 = arith.constant 0 : index
    %c0_2 = arith.constant 0 : index
    %2 = vector.load %arg2[%c0_1, %c0_2] : memref<32x128xbf16, #tpu.memory_space<vmem>>, vector<32x128xbf16>
    %cst = arith.constant dense<0.000000e+00> : vector<16x128xf32>
    %3 = tpu.matmul %1, %2, %cst {dimension_numbers = #tpu.dot_dimension_numbers<[1], [0], [0], [1], [0, 0, 1, 1], [], []>} : vector<16x32xbf16>, vector<32x128xbf16>, vector<16x128xf32> -> vector<16x128xf32>
    %c0_3 = arith.constant 0 : index
    %c0_4 = arith.constant 0 : index
    %4 = vector.load %arg3[%c0_3, %c0_4] : memref<1x128xf32, #tpu.memory_space<vmem>>, vector<1x128xf32>
    %5 = vector.broadcast %4 : vector<1x128xf32> to vector<16x128xf32>
    %6 = arith.addf %3, %5 : vector<16x128xf32>
    %cst_5 = arith.constant 0.000000e+00 : f32
    %7 = vector.broadcast %cst_5 : f32 to vector<16x128xf32>
    %8 = arith.maximumf %6, %7 : vector<16x128xf32>
    %9 = arith.truncf %8 : vector<16x128xf32> to vector<16x128xbf16>
    %c0_6 = arith.constant 0 : index
    %c0_7 = arith.constant 0 : index
    %10 = vector.load %arg4[%c0_6, %c0_7] : memref<128x128xbf16, #tpu.memory_space<vmem>>, vector<128x128xbf16>
    %cst_8 = arith.constant dense<0.000000e+00> : vector<16x128xf32>
    %11 = tpu.matmul %9, %10, %cst_8 {dimension_numbers = #tpu.dot_dimension_numbers<[1], [0], [0], [1], [0, 0, 1, 1], [], []>} : vector<16x128xbf16>, vector<128x128xbf16>, vector<16x128xf32> -> vector<16x128xf32>
    %c0_9 = arith.constant 0 : index
    %c0_10 = arith.constant 0 : index
    %12 = vector.load %arg5[%c0_9, %c0_10] : memref<1x128xf32, #tpu.memory_space<vmem>>, vector<1x128xf32>
    %13 = vector.broadcast %12 : vector<1x128xf32> to vector<16x128xf32>
    %14 = arith.addf %11, %13 : vector<16x128xf32>
    %cst_11 = arith.constant 0.000000e+00 : f32
    %15 = vector.broadcast %cst_11 : f32 to vector<16x128xf32>
    %16 = arith.maximumf %14, %15 : vector<16x128xf32>
    %17 = arith.truncf %16 : vector<16x128xf32> to vector<16x128xbf16>
    %c0_12 = arith.constant 0 : index
    %c0_13 = arith.constant 0 : index
    %18 = vector.load %arg6[%c0_12, %c0_13] : memref<128x128xbf16, #tpu.memory_space<vmem>>, vector<128x128xbf16>
    %cst_14 = arith.constant dense<0.000000e+00> : vector<16x128xf32>
    %19 = tpu.matmul %17, %18, %cst_14 {dimension_numbers = #tpu.dot_dimension_numbers<[1], [0], [0], [1], [0, 0, 1, 1], [], []>} : vector<16x128xbf16>, vector<128x128xbf16>, vector<16x128xf32> -> vector<16x128xf32>
    %c0_15 = arith.constant 0 : index
    %c0_16 = arith.constant 0 : index
    %20 = vector.load %arg7[%c0_15, %c0_16] : memref<1x128xf32, #tpu.memory_space<vmem>>, vector<1x128xf32>
    %21 = vector.broadcast %20 : vector<1x128xf32> to vector<16x128xf32>
    %22 = arith.addf %19, %21 : vector<16x128xf32>
    %c0_17 = arith.constant 0 : index
    %c0_18 = arith.constant 0 : index
    %23 = vector.load %arg8[%c0_17, %c0_18] : memref<16x128xf32, #tpu.memory_space<vmem>>, vector<16x128xf32>
    tpu.vector_store %arg8[%c0_17, %c0_18], %22 {strides = array<i32>} : memref<16x128xf32, #tpu.memory_space<vmem>>, vector<16x128xf32>,
    return
  }
  func.func @transform_0(%arg0: i32) -> (i32, i32) {
    %c0_i32 = arith.constant 0 : i32
    %c0_i32_0 = arith.constant 0 : i32
    return %arg0, %c0_i32 : i32, i32
  }
  func.func @transform_1(%arg0: i32) -> (i32, i32) {
    %c0_i32 = arith.constant 0 : i32
    %c0_i32_0 = arith.constant 0 : i32
    %c0_i32_1 = arith.constant 0 : i32
    return %c0_i32, %c0_i32_0 : i32, i32
  }
  func.func @transform_2(%arg0: i32) -> (i32, i32) {
    %c0_i32 = arith.constant 0 : i32
    %c0_i32_0 = arith.constant 0 : i32
    %c0_i32_1 = arith.constant 0 : i32
    return %c0_i32, %c0_i32_0 : i32, i32
  }
  func.func @transform_3(%arg0: i32) -> (i32, i32) {
    %c0_i32 = arith.constant 0 : i32
    %c0_i32_0 = arith.constant 0 : i32
    %c0_i32_1 = arith.constant 0 : i32
    return %c0_i32, %c0_i32_0 : i32, i32
  }
  func.func @transform_4(%arg0: i32) -> (i32, i32) {
    %c0_i32 = arith.constant 0 : i32
    %c0_i32_0 = arith.constant 0 : i32
    %c0_i32_1 = arith.constant 0 : i32
    return %c0_i32, %c0_i32_0 : i32, i32
  }
  func.func @transform_5(%arg0: i32) -> (i32, i32) {
    %c0_i32 = arith.constant 0 : i32
    %c0_i32_0 = arith.constant 0 : i32
    %c0_i32_1 = arith.constant 0 : i32
    return %c0_i32, %c0_i32_0 : i32, i32
  }
  func.func @transform_6(%arg0: i32) -> (i32, i32) {
    %c0_i32 = arith.constant 0 : i32
    %c0_i32_0 = arith.constant 0 : i32
    %c0_i32_1 = arith.constant 0 : i32
    return %c0_i32, %c0_i32_0 : i32, i32
  }
  func.func @transform_7(%arg0: i32) -> (i32, i32) {
    %c0_i32 = arith.constant 0 : i32
    %c0_i32_0 = arith.constant 0 : i32
    return %arg0, %c0_i32 : i32, i32
  }
}

</mosaic_0001>

<llo_original>
// kernel: tpu_custom_call.1
$region0: #{tpu_custom_call.1}
  #allocation0 [shape = 'u32[]', space=smem, size = 0x4, offset = 0x4, fixed_abs, tag = 'smem constant byte address 0x4 - core index']
  #allocation1 [shape = 'u32[144,128]{1,0:T(1,128)}', space=vmem, size = 0x12000, scoped, tag = 'internal scratch']
  %s0 = inlined_call_operand.hbm [shape: f32[16,32], index: 0, kind: input, shape index: {}]
  %s1 = inlined_call_operand.hbm [shape: bf16[32,128], index: 1, kind: input, shape index: {}]
  %s2 = inlined_call_operand.hbm [shape: f32[1,128], index: 2, kind: input, shape index: {}]
  %s3 = inlined_call_operand.hbm [shape: bf16[128,128], index: 3, kind: input, shape index: {}]
  %s4 = inlined_call_operand.hbm [shape: f32[1,128], index: 4, kind: input, shape index: {}]
  %s5 = inlined_call_operand.hbm [shape: bf16[128,128], index: 5, kind: input, shape index: {}]
  %s6 = inlined_call_operand.hbm [shape: f32[1,128], index: 6, kind: input, shape index: {}]
  %s7 = inlined_call_operand.hbm [shape: f32[16,128], index: 7, kind: output, shape index: {}]
  %s8 = sld [smem:[#allocation0]]
  $region66: #{tpu_custom_call.1} parent=0
    _
  %s10 = ssub.s32 1, %s8
  %s11 = scalar_select 0, %s10, %s8
  $region1: #{tpu_custom_call.1} parent=0
    #allocation2 [shape = 'u8[8192]{0}', space=vmem, size = 0x2000, scoped, tag = 'input window, operand 0, single buffered']
    #allocation3 [shape = 's32[1]{0}', space=sflag, size = 0x4, scoped, tag = 'scoped memory for tpu_custom_call.1']
    #allocation4 [shape = 's32[1]{0}', space=sflag, size = 0x4, scoped, tag = 'scoped memory for tpu_custom_call.1']
    #allocation5 [shape = 'u8[8192]{0}', space=vmem, size = 0x2000, scoped, tag = 'input window, operand 1, single buffered']
    #allocation6 [shape = 's32[1]{0}', space=sflag, size = 0x4, scoped, tag = 'scoped memory for tpu_custom_call.1']
    #allocation7 [shape = 'u8[512]{0}', space=vmem, size = 0x400, scoped, tag = 'input window, operand 2, single buffered']
    #allocation8 [shape = 'u8[32768]{0}', space=vmem, size = 0x8000, scoped, tag = 'input window, operand 3, single buffered']
    #allocation9 [shape = 's32[1]{0}', space=sflag, size = 0x4, scoped, tag = 'scoped memory for tpu_custom_call.1']
    #allocation10 [shape = 'u8[512]{0}', space=vmem, size = 0x400, scoped, tag = 'input window, operand 4, single buffered']
    #allocation11 [shape = 'u8[32768]{0}', space=vmem, size = 0x8000, scoped, tag = 'input window, operand 5, single buffered']
    #allocation12 [shape = 's32[1]{0}', space=sflag, size = 0x4, scoped, tag = 'scoped memory for tpu_custom_call.1']
    #allocation13 [shape = 'u8[512]{0}', space=vmem, size = 0x400, scoped, tag = 'input window, operand 6, single buffered']
    #allocation14 [shape = 'u8[8192]{0}', space=vmem, size = 0x2000, scoped, tag = 'output window, operand 0, single buffered']
    %12 = vsyncpa [#allocation3], 0
    %13 = vsyncpa [#allocation6], 0
    %14 = vsyncpa [#allocation9], 0
    %15 = vsyncpa [#allocation12], 0
    %16 = vsyncpa [#allocation4], 0
    // Predicated region
    $region2: #{tpu_custom_call.1} parent=1 // pred_check
      _
    $region3: #{tpu_custom_call.1} parent=1 // pred_check_branch
      %18 = sbr.rel (0) target = $region5
    $region4: #{tpu_custom_call.1} parent=1 // pred_region
      %s20 = ssub.s32 256, 256
      %21 = vsyncadd [#allocation3], %s20
      %s22 = sshll.u32 [#allocation2], 4
      %s23 = int_to_ptr.vmem [resolvable:$true] %s22
      %28 = dma.hbm_to_vmem [thread:$0]  %s0, 256, %s23, [#allocation3], 128, 128, 8
    $region5: #{tpu_custom_call.1} parent=1 // pred_fallthru
      _
    // Predicated region
    $region6: #{tpu_custom_call.1} parent=1 // pred_check
      _
    $region7: #{tpu_custom_call.1} parent=1 // pred_check_branch
      %30 = sbr.rel (0) target = $region9
    $region8: #{tpu_custom_call.1} parent=1 // pred_region
      %s32 = ssub.s32 256, 256
      %33 = vsyncadd [#allocation6], %s32
      %s34 = sshll.u32 [#allocation5], 4
      %s35 = int_to_ptr.vmem [resolvable:$true] %s34
      %40 = dma.hbm_to_vmem [thread:$0]  %s1, 256, %s35, [#allocation6], 64, 64, 4
    $region9: #{tpu_custom_call.1} parent=1 // pred_fallthru
      _
    // Predicated region
    $region10: #{tpu_custom_call.1} parent=1 // pred_check
      _
    $region11: #{tpu_custom_call.1} parent=1 // pred_check_branch
      %42 = sbr.rel (0) target = $region13
    $region12: #{tpu_custom_call.1} parent=1 // pred_region
      %s44 = ssub.s32 16, 16
      %45 = vsyncadd [#allocation6], %s44
      %s47 = sshll.u32 [#allocation7], 4
      %s48 = int_to_ptr.vmem [resolvable:$true] %s47
      %50 = dma.hbm_to_vmem [thread:$0]  %s2, 16, %s48, [#allocation6]
    $region13: #{tpu_custom_call.1} parent=1 // pred_fallthru
      _
    // Predicated region
    $region14: #{tpu_custom_call.1} parent=1 // pred_check
      _
    $region15: #{tpu_custom_call.1} parent=1 // pred_check_branch
      %52 = sbr.rel (0) target = $region17
    $region16: #{tpu_custom_call.1} parent=1 // pred_region
      %s54 = ssub.s32 1024, 1024
      %55 = vsyncadd [#allocation9], %s54
      %s56 = sshll.u32 [#allocation8], 4
      %s57 = int_to_ptr.vmem [resolvable:$true] %s56
      %62 = dma.hbm_to_vmem [thread:$0]  %s3, 1024, %s57, [#allocation9], 64, 64, 4
    $region17: #{tpu_custom_call.1} parent=1 // pred_fallthru
      _
    // Predicated region
    $region18: #{tpu_custom_call.1} parent=1 // pred_check
      _
    $region19: #{tpu_custom_call.1} parent=1 // pred_check_branch
      %64 = sbr.rel (0) target = $region21
    $region20: #{tpu_custom_call.1} parent=1 // pred_region
      %s66 = ssub.s32 16, 16
      %67 = vsyncadd [#allocation9], %s66
      %s69 = sshll.u32 [#allocation10], 4
      %s70 = int_to_ptr.vmem [resolvable:$true] %s69
      %72 = dma.hbm_to_vmem [thread:$0]  %s4, 16, %s70, [#allocation9]
    $region21: #{tpu_custom_call.1} parent=1 // pred_fallthru
      _
    // Predicated region
    $region22: #{tpu_custom_call.1} parent=1 // pred_check
      _
    $region23: #{tpu_custom_call.1} parent=1 // pred_check_branch
      %74 = sbr.rel (0) target = $region25
    $region24: #{tpu_custom_call.1} parent=1 // pred_region
      %s76 = ssub.s32 1024, 1024
      %77 = vsyncadd [#allocation12], %s76
      %s78 = sshll.u32 [#allocation11], 4
      %s79 = int_to_ptr.vmem [resolvable:$true] %s78
      %84 = dma.hbm_to_vmem [thread:$0]  %s5, 1024, %s79, [#allocation12], 64, 64, 4
    $region25: #{tpu_custom_call.1} parent=1 // pred_fallthru
      _
    // Predicated region
    $region26: #{tpu_custom_call.1} parent=1 // pred_check
      _
    $region27: #{tpu_custom_call.1} parent=1 // pred_check_branch
      %86 = sbr.rel (0) target = $region29
    $region28: #{tpu_custom_call.1} parent=1 // pred_region
      %s88 = ssub.s32 16, 16
      %89 = vsyncadd [#allocation12], %s88
      %s91 = sshll.u32 [#allocation13], 4
      %s92 = int_to_ptr.vmem [resolvable:$true] %s91
      %94 = dma.hbm_to_vmem [thread:$0]  %s6, 16, %s92, [#allocation12]
    $region29: #{tpu_custom_call.1} parent=1 // pred_fallthru
      _
    // Predicated region
    $region30: #{tpu_custom_call.1} parent=1 // pred_check
      _
    $region31: #{tpu_custom_call.1} parent=1 // pred_check_branch
      %96 = sbr.rel (0) target = $region33
    $region32: #{tpu_custom_call.1} parent=1 // pred_region
      %97 = dma.done [#allocation3], 256
    $region33: #{tpu_custom_call.1} parent=1 // pred_fallthru
      _
    // Predicated region
    $region34: #{tpu_custom_call.1} parent=1 // pred_check
      _
    $region35: #{tpu_custom_call.1} parent=1 // pred_check_branch
      %99 = sbr.rel (0) target = $region37
    $region36: #{tpu_custom_call.1} parent=1 // pred_region
      %100 = dma.done [#allocation6], 256
    $region37: #{tpu_custom_call.1} parent=1 // pred_fallthru
      _
    // Predicated region
    $region38: #{tpu_custom_call.1} parent=1 // pred_check
      _
    $region39: #{tpu_custom_call.1} parent=1 // pred_check_branch
      %102 = sbr.rel (0) target = $region41
    $region40: #{tpu_custom_call.1} parent=1 // pred_region
      %103 = dma.done [#allocation6], 16
    $region41: #{tpu_custom_call.1} parent=1 // pred_fallthru
      _
    // Predicated region
    $region42: #{tpu_custom_call.1} parent=1 // pred_check
      _
    $region43: #{tpu_custom_call.1} parent=1 // pred_check_branch
      %105 = sbr.rel (0) target = $region45
    $region44: #{tpu_custom_call.1} parent=1 // pred_region
      %106 = dma.done [#allocation9], 1024
    $region45: #{tpu_custom_call.1} parent=1 // pred_fallthru
      _
    // Predicated region
    $region46: #{tpu_custom_call.1} parent=1 // pred_check
      _
    $region47: #{tpu_custom_call.1} parent=1 // pred_check_branch
      %108 = sbr.rel (0) target = $region49
    $region48: #{tpu_custom_call.1} parent=1 // pred_region
      %109 = dma.done [#allocation9], 16
    $region49: #{tpu_custom_call.1} parent=1 // pred_fallthru
      _
    // Predicated region
    $region50: #{tpu_custom_call.1} parent=1 // pred_check
      _
    $region51: #{tpu_custom_call.1} parent=1 // pred_check_branch
      %111 = sbr.rel (0) target = $region53
    $region52: #{tpu_custom_call.1} parent=1 // pred_region
      %112 = dma.done [#allocation12], 1024
    $region53: #{tpu_custom_call.1} parent=1 // pred_fallthru
      _
    // Predicated region
    $region54: #{tpu_custom_call.1} parent=1 // pred_check
      _
    $region55: #{tpu_custom_call.1} parent=1 // pred_check_branch
      %114 = sbr.rel (0) target = $region57
    $region56: #{tpu_custom_call.1} parent=1 // pred_region
      %115 = dma.done [#allocation12], 16
    $region57: #{tpu_custom_call.1} parent=1 // pred_fallthru
      _
    %v117 = vld [vmem:[#allocation2] sm:$0xff]
    %v118 = vld [vmem:[#allocation2 + $0x8] sm:$0xff]
    %v119 = vpack.c.bf16 %v118, %v117
    %v120 = vld [vmem:[#allocation5] sm:$0xf]
    %v121 = vld [vmem:[#allocation5 + $0x4] sm:$0xf]
    %v122 = vld [vmem:[#allocation5 + $0x8] sm:$0xf]
    %v123 = vld [vmem:[#allocation5 + $0xc] sm:$0xf]
    %v124 = vld [vmem:[#allocation7] sm:$0x1]
    %v126 = vlaneseq
    %v127 = vshrl.u32 %v126, 7
    %v128 = vsub.s32 0, %v127
    %v129 = vrot.slane %v124, %v128
    %v135 = vunpack.c.l.b16 %v120
    %v136 = vunpack.c.l.b16 %v121
    %v137 = vunpack.c.l.b16 %v122
    %v138 = vunpack.c.l.b16 %v123
    %v139 = vpack.c.b16 %v136, %v135
    %v140 = vpack.c.b16 %v138, %v137
    %vm143 = vcmask 261120
    %v145 = vsel %vm143, %v119, 0
    %147 = vmatprep.subr.bf16.mxu0 0
    %148 = vmatpush1.bf16.msra.mxu0 %v139
    %149 = vmatprep.subr.bf16.mxu0 0
    %150 = vmatpush1.bf16.msra.mxu0 %v140
    %151 = vmatprep.subr.bf16.mxu0 0
    %152 = vmatpush1.bf16.msra.mxu0 0
    %153 = vmatprep.subr.bf16.mxu0 0
    %154 = vmatpush1.bf16.msra.mxu0 0
    %155 = vmatprep.subr.bf16.mxu0 0
    %156 = vmatpush1.bf16.msra.mxu0 0
    %157 = vmatprep.subr.bf16.mxu0 0
    %158 = vmatpush1.bf16.msra.mxu0 0
    %159 = vmatprep.subr.bf16.mxu0 0
    %160 = vmatpush1.bf16.msra.mxu0 0
    %161 = vmatprep.subr.bf16.mxu0 0
    %162 = vmatpush1.bf16.msra.mxu0 0
    %163 = vmatprep.subr.bf16.mxu0 0
    %164 = vmatpush1.bf16.msra.mxu0 0
    %165 = vmatprep.subr.bf16.mxu0 0
    %166 = vmatpush1.bf16.msra.mxu0 0
    %167 = vmatprep.subr.bf16.mxu0 0
    %168 = vmatpush1.bf16.msra.mxu0 0
    %169 = vmatprep.subr.bf16.mxu0 0
    %170 = vmatpush1.bf16.msra.mxu0 0
    %171 = vmatprep.subr.bf16.mxu0 0
    %172 = vmatpush1.bf16.msra.mxu0 0
    %173 = vmatprep.subr.bf16.mxu0 0
    %174 = vmatpush1.bf16.msra.mxu0 0
    %175 = vmatprep.subr.bf16.mxu0 0
    %176 = vmatpush1.bf16.msra.mxu0 0
    %177 = vmatprep.subr.bf16.mxu0 0
    %178 = vmatpush1.bf16.msra.mxu0 0
    %179 = vmatprep.mubr.bf16.mxu0 0
    %180 = vmatmul.mubr.bf16.gmra.mrb[0].mxu0 %v145
    %v181 = vpop.f32.mrb[0].mxu0
    %v182 = vadd.f32 %v129, %v181
    %v183 = vpop.f32.mrb[0].mxu0
    %v184 = vpop.f32.mrb[0].mxu0
    %v185 = vadd.f32 %v129, %v184
    %v186 = vpop.f32.mrb[0].mxu0
    %187 = vdwg.mxu0
    %v188 = vmax.f32 %v182, 0.0
    %v189 = vmax.f32 %v185, 0.0
    %v190 = vpack.c.bf16 %v189, %v188
    %v191 = vld [vmem:[#allocation8] sm:$0xf]
    %v192 = vld [vmem:[#allocation8 + $0x4] sm:$0xf]
    %v193 = vld [vmem:[#allocation8 + $0x8] sm:$0xf]
    %v194 = vld [vmem:[#allocation8 + $0xc] sm:$0xf]
    %v195 = vld [vmem:[#allocation8 + $0x10] sm:$0xf]
    %v196 = vld [vmem:[#allocation8 + $0x14] sm:$0xf]
    %v197 = vld [vmem:[#allocation8 + $0x18] sm:$0xf]
    %v198 = vld [vmem:[#allocation8 + $0x1c] sm:$0xf]
    %v199 = vld [vmem:[#allocation8 + $0x20] sm:$0xf]
    %v200 = vld [vmem:[#allocation8 + $0x24] sm:$0xf]
    %v201 = vld [vmem:[#allocation8 + $0x28] sm:$0xf]
    %v202 = vld [vmem:[#allocation8 + $0x2c] sm:$0xf]
    %v203 = vld [vmem:[#allocation8 + $0x30] sm:$0xf]
    %v204 = vld [vmem:[#allocation8 + $0x34] sm:$0xf]
    %v205 = vld [vmem:[#allocation8 + $0x38] sm:$0xf]
    %v206 = vld [vmem:[#allocation8 + $0x3c] sm:$0xf]
    %v207 = vld [vmem:[#allocation10] sm:$0x1]
    %v209 = vlaneseq
    %v210 = vshrl.u32 %v209, 7
    %v211 = vsub.s32 0, %v210
    %v212 = vrot.slane %v207, %v211
    %v230 = vunpack.c.l.b16 %v191
    %v231 = vunpack.c.l.b16 %v192
    %v232 = vunpack.c.l.b16 %v193
    %v233 = vunpack.c.l.b16 %v194
    %v234 = vunpack.c.l.b16 %v195
    %v235 = vunpack.c.l.b16 %v196
    %v236 = vunpack.c.l.b16 %v197
    %v237 = vunpack.c.l.b16 %v198
    %v238 = vunpack.c.l.b16 %v199
    %v239 = vunpack.c.l.b16 %v200
    %v240 = vunpack.c.l.b16 %v201
    %v241 = vunpack.c.l.b16 %v202
    %v242 = vunpack.c.l.b16 %v203
    %v243 = vunpack.c.l.b16 %v204
    %v244 = vunpack.c.l.b16 %v205
    %v245 = vunpack.c.l.b16 %v206
    %v246 = vpack.c.b16 %v231, %v230
    %v247 = vpack.c.b16 %v233, %v232
    %v248 = vpack.c.b16 %v235, %v234
    %v249 = vpack.c.b16 %v237, %v236
    %v250 = vpack.c.b16 %v239, %v238
    %v251 = vpack.c.b16 %v241, %v240
    %v252 = vpack.c.b16 %v243, %v242
    %v253 = vpack.c.b16 %v245, %v244
    %262 = vmatprep.subr.bf16.mxu0 0
    %263 = vmatpush1.bf16.msra.mxu0 %v246
    %264 = vmatprep.subr.bf16.mxu0 0
    %265 = vmatpush1.bf16.msra.mxu0 %v247
    %266 = vmatprep.subr.bf16.mxu0 0
    %267 = vmatpush1.bf16.msra.mxu0 %v248
    %268 = vmatprep.subr.bf16.mxu0 0
    %269 = vmatpush1.bf16.msra.mxu0 %v249
    %270 = vmatprep.subr.bf16.mxu0 0
    %271 = vmatpush1.bf16.msra.mxu0 %v250
    %272 = vmatprep.subr.bf16.mxu0 0
    %273 = vmatpush1.bf16.msra.mxu0 %v251
    %274 = vmatprep.subr.bf16.mxu0 0
    %275 = vmatpush1.bf16.msra.mxu0 %v252
    %276 = vmatprep.subr.bf16.mxu0 0
    %277 = vmatpush1.bf16.msra.mxu0 %v253
    %278 = vmatprep.subr.bf16.mxu0 0
    %279 = vmatpush1.bf16.msra.mxu0 0
    %280 = vmatprep.subr.bf16.mxu0 0
    %281 = vmatpush1.bf16.msra.mxu0 0
    %282 = vmatprep.subr.bf16.mxu0 0
    %283 = vmatpush1.bf16.msra.mxu0 0
    %284 = vmatprep.subr.bf16.mxu0 0
    %285 = vmatpush1.bf16.msra.mxu0 0
    %286 = vmatprep.subr.bf16.mxu0 0
    %287 = vmatpush1.bf16.msra.mxu0 0
    %288 = vmatprep.subr.bf16.mxu0 0
    %289 = vmatpush1.bf16.msra.mxu0 0
    %290 = vmatprep.subr.bf16.mxu0 0
    %291 = vmatpush1.bf16.msra.mxu0 0
    %292 = vmatprep.subr.bf16.mxu0 0
    %293 = vmatpush1.bf16.msra.mxu0 0
    %294 = vmatprep.mubr.bf16.mxu0 0
    %295 = vmatmul.mubr.bf16.gmra.mrb[0].mxu0 %v190
    %v296 = vpop.f32.mrb[0].mxu0
    %v297 = vadd.f32 %v212, %v296
    %v298 = vpop.f32.mrb[0].mxu0
    %v299 = vpop.f32.mrb[0].mxu0
    %v300 = vadd.f32 %v212, %v299
    %v301 = vpop.f32.mrb[0].mxu0
    %302 = vdwg.mxu0
    %v303 = vmax.f32 %v297, 0.0
    %v304 = vmax.f32 %v300, 0.0
    %v305 = vpack.c.bf16 %v304, %v303
    %v306 = vld [vmem:[#allocation11] sm:$0xf]
    %v307 = vld [vmem:[#allocation11 + $0x4] sm:$0xf]
    %v308 = vld [vmem:[#allocation11 + $0x8] sm:$0xf]
    %v309 = vld [vmem:[#allocation11 + $0xc] sm:$0xf]
    %v310 = vld [vmem:[#allocation11 + $0x10] sm:$0xf]
    %v311 = vld [vmem:[#allocation11 + $0x14] sm:$0xf]
    %v312 = vld [vmem:[#allocation11 + $0x18] sm:$0xf]
    %v313 = vld [vmem:[#allocation11 + $0x1c] sm:$0xf]
    %v314 = vld [vmem:[#allocation11 + $0x20] sm:$0xf]
    %v315 = vld [vmem:[#allocation11 + $0x24] sm:$0xf]
    %v316 = vld [vmem:[#allocation11 + $0x28] sm:$0xf]
    %v317 = vld [vmem:[#allocation11 + $0x2c] sm:$0xf]
    %v318 = vld [vmem:[#allocation11 + $0x30] sm:$0xf]
    %v319 = vld [vmem:[#allocation11 + $0x34] sm:$0xf]
    %v320 = vld [vmem:[#allocation11 + $0x38] sm:$0xf]
    %v321 = vld [vmem:[#allocation11 + $0x3c] sm:$0xf]
    %v322 = vld [vmem:[#allocation13] sm:$0x1]
    %v324 = vlaneseq
    %v325 = vshrl.u32 %v324, 7
    %v326 = vsub.s32 0, %v325
    %v327 = vrot.slane %v322, %v326
    %v345 = vunpack.c.l.b16 %v306
    %v346 = vunpack.c.l.b16 %v307
    %v347 = vunpack.c.l.b16 %v308
    %v348 = vunpack.c.l.b16 %v309
    %v349 = vunpack.c.l.b16 %v310
    %v350 = vunpack.c.l.b16 %v311
    %v351 = vunpack.c.l.b16 %v312
    %v352 = vunpack.c.l.b16 %v313
    %v353 = vunpack.c.l.b16 %v314
    %v354 = vunpack.c.l.b16 %v315
    %v355 = vunpack.c.l.b16 %v316
    %v356 = vunpack.c.l.b16 %v317
    %v357 = vunpack.c.l.b16 %v318
    %v358 = vunpack.c.l.b16 %v319
    %v359 = vunpack.c.l.b16 %v320
    %v360 = vunpack.c.l.b16 %v321
    %v361 = vpack.c.b16 %v346, %v345
    %v362 = vpack.c.b16 %v348, %v347
    %v363 = vpack.c.b16 %v350, %v349
    %v364 = vpack.c.b16 %v352, %v351
    %v365 = vpack.c.b16 %v354, %v353
    %v366 = vpack.c.b16 %v356, %v355
    %v367 = vpack.c.b16 %v358, %v357
    %v368 = vpack.c.b16 %v360, %v359
    %377 = vmatprep.subr.bf16.mxu0 0
    %378 = vmatpush1.bf16.msra.mxu0 %v361
    %379 = vmatprep.subr.bf16.mxu0 0
    %380 = vmatpush1.bf16.msra.mxu0 %v362
    %381 = vmatprep.subr.bf16.mxu0 0
    %382 = vmatpush1.bf16.msra.mxu0 %v363
    %383 = vmatprep.subr.bf16.mxu0 0
    %384 = vmatpush1.bf16.msra.mxu0 %v364
    %385 = vmatprep.subr.bf16.mxu0 0
    %386 = vmatpush1.bf16.msra.mxu0 %v365
    %387 = vmatprep.subr.bf16.mxu0 0
    %388 = vmatpush1.bf16.msra.mxu0 %v366
    %389 = vmatprep.subr.bf16.mxu0 0
    %390 = vmatpush1.bf16.msra.mxu0 %v367
    %391 = vmatprep.subr.bf16.mxu0 0
    %392 = vmatpush1.bf16.msra.mxu0 %v368
    %393 = vmatprep.subr.bf16.mxu0 0
    %394 = vmatpush1.bf16.msra.mxu0 0
    %395 = vmatprep.subr.bf16.mxu0 0
    %396 = vmatpush1.bf16.msra.mxu0 0
    %397 = vmatprep.subr.bf16.mxu0 0
    %398 = vmatpush1.bf16.msra.mxu0 0
    %399 = vmatprep.subr.bf16.mxu0 0
    %400 = vmatpush1.bf16.msra.mxu0 0
    %401 = vmatprep.subr.bf16.mxu0 0
    %402 = vmatpush1.bf16.msra.mxu0 0
    %403 = vmatprep.subr.bf16.mxu0 0
    %404 = vmatpush1.bf16.msra.mxu0 0
    %405 = vmatprep.subr.bf16.mxu0 0
    %406 = vmatpush1.bf16.msra.mxu0 0
    %407 = vmatprep.subr.bf16.mxu0 0
    %408 = vmatpush1.bf16.msra.mxu0 0
    %409 = vmatprep.mubr.bf16.mxu0 0
    %410 = vmatmul.mubr.bf16.gmra.mrb[0].mxu0 %v305
    %v411 = vpop.f32.mrb[0].mxu0
    %v412 = vadd.f32 %v327, %v411
    %v413 = vpop.f32.mrb[0].mxu0
    %v414 = vpop.f32.mrb[0].mxu0
    %v415 = vadd.f32 %v327, %v414
    %v416 = vpop.f32.mrb[0].mxu0
    %417 = vdwg.mxu0
    %418 = vst [vmem:[#allocation14] sm:$0xff] %v412
    %419 = vst [vmem:[#allocation14 + $0x8] sm:$0xff] %v415
    // Predicated region
    $region58: #{tpu_custom_call.1} parent=1 // pred_check
      _
    $region59: #{tpu_custom_call.1} parent=1 // pred_check_branch
      %421 = sbr.rel (0) target = $region61
    $region60: #{tpu_custom_call.1} parent=1 // pred_region
      %s423 = ssub.s32 256, 256
      %424 = vsyncadd [#allocation4], %s423
      %s425 = sshll.u32 [#allocation14], 4
      %s426 = int_to_ptr.vmem [resolvable:$true] %s425
      %431 = dma.vmem_to_hbm [thread:$0]  %s426, 256, %s7, [#allocation4], 128, 128, 8
    $region61: #{tpu_custom_call.1} parent=1 // pred_fallthru
      _
    // Predicated region
    $region62: #{tpu_custom_call.1} parent=1 // pred_check
      _
    $region63: #{tpu_custom_call.1} parent=1 // pred_check_branch
      %433 = sbr.rel (0) target = $region65
    $region64: #{tpu_custom_call.1} parent=1 // pred_region
      %434 = dma.done [#allocation4], 256
    $region65: #{tpu_custom_call.1} parent=1 // pred_fallthru
      _
    %435 = vsyncpa [#allocation3], 1
    %436 = vsyncpa [#allocation6], 1
    %437 = vsyncpa [#allocation9], 1
    %438 = vsyncpa [#allocation12], 1
    %439 = vsyncpa [#allocation4], 1

// kernel: tpu_custom_call.1
$region0: #{tpu_custom_call.1}
  #allocation0 [shape = 'u32[]', space=smem, size = 0x4, offset = 0x4, fixed_abs, tag = 'smem constant byte address 0x4 - core index']
  #allocation1 [shape = 'u32[144,128]{1,0:T(1,128)}', space=vmem, size = 0x12000, scoped, tag = 'internal scratch']
  %s0 = inlined_call_operand.hbm [shape: f32[16,32], index: 0, kind: input, shape index: {}]
  %s1 = inlined_call_operand.hbm [shape: bf16[32,128], index: 1, kind: input, shape index: {}]
  %s2 = inlined_call_operand.hbm [shape: f32[1,128], index: 2, kind: input, shape index: {}]
  %s3 = inlined_call_operand.hbm [shape: bf16[128,128], index: 3, kind: input, shape index: {}]
  %s4 = inlined_call_operand.hbm [shape: f32[1,128], index: 4, kind: input, shape index: {}]
  %s5 = inlined_call_operand.hbm [shape: bf16[128,128], index: 5, kind: input, shape index: {}]
  %s6 = inlined_call_operand.hbm [shape: f32[1,128], index: 6, kind: input, shape index: {}]
  %s7 = inlined_call_operand.hbm [shape: f32[16,128], index: 7, kind: output, shape index: {}]
  %s8 = sld [smem:[#allocation0]]
  $region66: #{tpu_custom_call.1} parent=0
    _
  %s10 = ssub.s32 1, %s8
  %s11 = scalar_select 0, %s10, %s8
  $region1: #{tpu_custom_call.1} parent=0
    #allocation2 [shape = 'u8[8192]{0}', space=vmem, size = 0x2000, scoped, tag = 'input window, operand 0, single buffered']
    #allocation3 [shape = 's32[1]{0}', space=sflag, size = 0x4, scoped, tag = 'scoped memory for tpu_custom_call.1']
    #allocation4 [shape = 's32[1]{0}', space=sflag, size = 0x4, scoped, tag = 'scoped memory for tpu_custom_call.1']
    #allocation5 [shape = 'u8[8192]{0}', space=vmem, size = 0x2000, scoped, tag = 'input window, operand 1, single buffered']
    #allocation6 [shape = 's32[1]{0}', space=sflag, size = 0x4, scoped, tag = 'scoped memory for tpu_custom_call.1']
    #allocation7 [shape = 'u8[512]{0}', space=vmem, size = 0x400, scoped, tag = 'input window, operand 2, single buffered']
    #allocation8 [shape = 'u8[32768]{0}', space=vmem, size = 0x8000, scoped, tag = 'input window, operand 3, single buffered']
    #allocation9 [shape = 's32[1]{0}', space=sflag, size = 0x4, scoped, tag = 'scoped memory for tpu_custom_call.1']
    #allocation10 [shape = 'u8[512]{0}', space=vmem, size = 0x400, scoped, tag = 'input window, operand 4, single buffered']
    #allocation11 [shape = 'u8[32768]{0}', space=vmem, size = 0x8000, scoped, tag = 'input window, operand 5, single buffered']
    #allocation12 [shape = 's32[1]{0}', space=sflag, size = 0x4, scoped, tag = 'scoped memory for tpu_custom_call.1']
    #allocation13 [shape = 'u8[512]{0}', space=vmem, size = 0x400, scoped, tag = 'input window, operand 6, single buffered']
    #allocation14 [shape = 'u8[8192]{0}', space=vmem, size = 0x2000, scoped, tag = 'output window, operand 0, single buffered']
    %12 = vsyncpa [#allocation3], 0
    %13 = vsyncpa [#allocation6], 0
    %14 = vsyncpa [#allocation9], 0
    %15 = vsyncpa [#allocation12], 0
    %16 = vsyncpa [#allocation4], 0
    // Predicated region
    $region2: #{tpu_custom_call.1} parent=1 // pred_check
      _
    $region3: #{tpu_custom_call.1} parent=1 // pred_check_branch
      %18 = sbr.rel (0) target = $region5
    $region4: #{tpu_custom_call.1} parent=1 // pred_region
      %s20 = ssub.s32 256, 256
      %21 = vsyncadd [#allocation3], %s20
      %s22 = sshll.u32 [#allocation2], 4
      %s23 = int_to_ptr.vmem [resolvable:$true] %s22
      %28 = dma.hbm_to_vmem [thread:$0]  %s0, 256, %s23, [#allocation3], 128, 128, 8
    $region5: #{tpu_custom_call.1} parent=1 // pred_fallthru
      _
    // Predicated region
    $region6: #{tpu_custom_call.1} parent=1 // pred_check
      _
    $region7: #{tpu_custom_call.1} parent=1 // pred_check_branch
      %30 = sbr.rel (0) target = $region9
    $region8: #{tpu_custom_call.1} parent=1 // pred_region
      %s32 = ssub.s32 256, 256
      %33 = vsyncadd [#allocation6], %s32
      %s34 = sshll.u32 [#allocation5], 4
      %s35 = int_to_ptr.vmem [resolvable:$true] %s34
      %40 = dma.hbm_to_vmem [thread:$0]  %s1, 256, %s35, [#allocation6], 64, 64, 4
    $region9: #{tpu_custom_call.1} parent=1 // pred_fallthru
      _
    // Predicated region
    $region10: #{tpu_custom_call.1} parent=1 // pred_check
      _
    $region11: #{tpu_custom_call.1} parent=1 // pred_check_branch
      %42 = sbr.rel (0) target = $region13
    $region12: #{tpu_custom_call.1} parent=1 // pred_region
      %s44 = ssub.s32 16, 16
      %45 = vsyncadd [#allocation6], %s44
      %s47 = sshll.u32 [#allocation7], 4
      %s48 = int_to_ptr.vmem [resolvable:$true] %s47
      %50 = dma.hbm_to_vmem [thread:$0]  %s2, 16, %s48, [#allocation6]
    $region13: #{tpu_custom_call.1} parent=1 // pred_fallthru
      _
    // Predicated region
    $region14: #{tpu_custom_call.1} parent=1 // pred_check
      _
    $region15: #{tpu_custom_call.1} parent=1 // pred_check_branch
      %52 = sbr.rel (0) target = $region17
    $region16: #{tpu_custom_call.1} parent=1 // pred_region
      %s54 = ssub.s32 1024, 1024
      %55 = vsyncadd [#allocation9], %s54
      %s56 = sshll.u32 [#allocation8], 4
      %s57 = int_to_ptr.vmem [resolvable:$true] %s56
      %62 = dma.hbm_to_vmem [thread:$0]  %s3, 1024, %s57, [#allocation9], 64, 64, 4
    $region17: #{tpu_custom_call.1} parent=1 // pred_fallthru
      _
    // Predicated region
    $region18: #{tpu_custom_call.1} parent=1 // pred_check
      _
    $region19: #{tpu_custom_call.1} parent=1 // pred_check_branch
      %64 = sbr.rel (0) target = $region21
    $region20: #{tpu_custom_call.1} parent=1 // pred_region
      %s66 = ssub.s32 16, 16
      %67 = vsyncadd [#allocation9], %s66
      %s69 = sshll.u32 [#allocation10], 4
      %s70 = int_to_ptr.vmem [resolvable:$true] %s69
      %72 = dma.hbm_to_vmem [thread:$0]  %s4, 16, %s70, [#allocation9]
    $region21: #{tpu_custom_call.1} parent=1 // pred_fallthru
      _
    // Predicated region
    $region22: #{tpu_custom_call.1} parent=1 // pred_check
      _
    $region23: #{tpu_custom_call.1} parent=1 // pred_check_branch
      %74 = sbr.rel (0) target = $region25
    $region24: #{tpu_custom_call.1} parent=1 // pred_region
      %s76 = ssub.s32 1024, 1024
      %77 = vsyncadd [#allocation12], %s76
      %s78 = sshll.u32 [#allocation11], 4
      %s79 = int_to_ptr.vmem [resolvable:$true] %s78
      %84 = dma.hbm_to_vmem [thread:$0]  %s5, 1024, %s79, [#allocation12], 64, 64, 4
    $region25: #{tpu_custom_call.1} parent=1 // pred_fallthru
      _
    // Predicated region
    $region26: #{tpu_custom_call.1} parent=1 // pred_check
      _
    $region27: #{tpu_custom_call.1} parent=1 // pred_check_branch
      %86 = sbr.rel (0) target = $region29
    $region28: #{tpu_custom_call.1} parent=1 // pred_region
      %s88 = ssub.s32 16, 16
      %89 = vsyncadd [#allocation12], %s88
      %s91 = sshll.u32 [#allocation13], 4
      %s92 = int_to_ptr.vmem [resolvable:$true] %s91
      %94 = dma.hbm_to_vmem [thread:$0]  %s6, 16, %s92, [#allocation12]
    $region29: #{tpu_custom_call.1} parent=1 // pred_fallthru
      _
    // Predicated region
    $region30: #{tpu_custom_call.1} parent=1 // pred_check
      _
    $region31: #{tpu_custom_call.1} parent=1 // pred_check_branch
      %96 = sbr.rel (0) target = $region33
    $region32: #{tpu_custom_call.1} parent=1 // pred_region
      %97 = dma.done [#allocation3], 256
    $region33: #{tpu_custom_call.1} parent=1 // pred_fallthru
      _
    // Predicated region
    $region34: #{tpu_custom_call.1} parent=1 // pred_check
      _
    $region35: #{tpu_custom_call.1} parent=1 // pred_check_branch
      %99 = sbr.rel (0) target = $region37
    $region36: #{tpu_custom_call.1} parent=1 // pred_region
      %100 = dma.done [#allocation6], 256
    $region37: #{tpu_custom_call.1} parent=1 // pred_fallthru
      _
    // Predicated region
    $region38: #{tpu_custom_call.1} parent=1 // pred_check
      _
    $region39: #{tpu_custom_call.1} parent=1 // pred_check_branch
      %102 = sbr.rel (0) target = $region41
    $region40: #{tpu_custom_call.1} parent=1 // pred_region
      %103 = dma.done [#allocation6], 16
    $region41: #{tpu_custom_call.1} parent=1 // pred_fallthru
      _
    // Predicated region
    $region42: #{tpu_custom_call.1} parent=1 // pred_check
      _
    $region43: #{tpu_custom_call.1} parent=1 // pred_check_branch
      %105 = sbr.rel (0) target = $region45
    $region44: #{tpu_custom_call.1} parent=1 // pred_region
      %106 = dma.done [#allocation9], 1024
    $region45: #{tpu_custom_call.1} parent=1 // pred_fallthru
      _
    // Predicated region
    $region46: #{tpu_custom_call.1} parent=1 // pred_check
      _
    $region47: #{tpu_custom_call.1} parent=1 // pred_check_branch
      %108 = sbr.rel (0) target = $region49
    $region48: #{tpu_custom_call.1} parent=1 // pred_region
      %109 = dma.done [#allocation9], 16
    $region49: #{tpu_custom_call.1} parent=1 // pred_fallthru
      _
    // Predicated region
    $region50: #{tpu_custom_call.1} parent=1 // pred_check
      _
    $region51: #{tpu_custom_call.1} parent=1 // pred_check_branch
      %111 = sbr.rel (0) target = $region53
    $region52: #{tpu_custom_call.1} parent=1 // pred_region
      %112 = dma.done [#allocation12], 1024
    $region53: #{tpu_custom_call.1} parent=1 // pred_fallthru
      _
    // Predicated region
    $region54: #{tpu_custom_call.1} parent=1 // pred_check
      _
    $region55: #{tpu_custom_call.1} parent=1 // pred_check_branch
      %114 = sbr.rel (0) target = $region57
    $region56: #{tpu_custom_call.1} parent=1 // pred_region
      %115 = dma.done [#allocation12], 16
    $region57: #{tpu_custom_call.1} parent=1 // pred_fallthru
      _
    %v117 = vld [vmem:[#allocation2] sm:$0xff]
    %v118 = vld [vmem:[#allocation2 + $0x8] sm:$0xff]
    %v119 = vpack.c.bf16 %v118, %v117
    %v120 = vld [vmem:[#allocation5] sm:$0xf]
    %v121 = vld [vmem:[#allocation5 + $0x4] sm:$0xf]
    %v122 = vld [vmem:[#allocation5 + $0x8] sm:$0xf]
    %v123 = vld [vmem:[#allocation5 + $0xc] sm:$0xf]
    %v124 = vld [vmem:[#allocation7] sm:$0x1]
    %v126 = vlaneseq
    %v127 = vshrl.u32 %v126, 7
    %v128 = vsub.s32 0, %v127
    %v129 = vrot.slane %v124, %v128
    %v135 = vunpack.c.l.b16 %v120
    %v136 = vunpack.c.l.b16 %v121
    %v137 = vunpack.c.l.b16 %v122
    %v138 = vunpack.c.l.b16 %v123
    %v139 = vpack.c.b16 %v136, %v135
    %v140 = vpack.c.b16 %v138, %v137
    %vm143 = vcmask 261120
    %v145 = vsel %vm143, %v119, 0
    %147 = vmatprep.subr.bf16.mxu0 0
    %148 = vmatpush1.bf16.msra.mxu0 %v139
    %149 = vmatprep.subr.bf16.mxu0 0
    %150 = vmatpush1.bf16.msra.mxu0 %v140
    %151 = vmatprep.subr.bf16.mxu0 0
    %152 = vmatpush1.bf16.msra.mxu0 0
    %153 = vmatprep.subr.bf16.mxu0 0
    %154 = vmatpush1.bf16.msra.mxu0 0
    %155 = vmatprep.subr.bf16.mxu0 0
    %156 = vmatpush1.bf16.msra.mxu0 0
    %157 = vmatprep.subr.bf16.mxu0 0
    %158 = vmatpush1.bf16.msra.mxu0 0
    %159 = vmatprep.subr.bf16.mxu0 0
    %160 = vmatpush1.bf16.msra.mxu0 0
    %161 = vmatprep.subr.bf16.mxu0 0
    %162 = vmatpush1.bf16.msra.mxu0 0
    %163 = vmatprep.subr.bf16.mxu0 0
    %164 = vmatpush1.bf16.msra.mxu0 0
    %165 = vmatprep.subr.bf16.mxu0 0
    %166 = vmatpush1.bf16.msra.mxu0 0
    %167 = vmatprep.subr.bf16.mxu0 0
    %168 = vmatpush1.bf16.msra.mxu0 0
    %169 = vmatprep.subr.bf16.mxu0 0
    %170 = vmatpush1.bf16.msra.mxu0 0
    %171 = vmatprep.subr.bf16.mxu0 0
    %172 = vmatpush1.bf16.msra.mxu0 0
    %173 = vmatprep.subr.bf16.mxu0 0
    %174 = vmatpush1.bf16.msra.mxu0 0
    %175 = vmatprep.subr.bf16.mxu0 0
    %176 = vmatpush1.bf16.msra.mxu0 0
    %177 = vmatprep.subr.bf16.mxu0 0
    %178 = vmatpush1.bf16.msra.mxu0 0
    %179 = vmatprep.mubr.bf16.mxu0 0
    %180 = vmatmul.mubr.bf16.gmra.mrb[0].mxu0 %v145
    %v181 = vpop.f32.mrb[0].mxu0
    %v182 = vadd.f32 %v129, %v181
    %v183 = vpop.f32.mrb[0].mxu0
    %v184 = vpop.f32.mrb[0].mxu0
    %v185 = vadd.f32 %v129, %v184
    %v186 = vpop.f32.mrb[0].mxu0
    %187 = vdwg.mxu0
    %v188 = vmax.f32 %v182, 0.0
    %v189 = vmax.f32 %v185, 0.0
    %v190 = vpack.c.bf16 %v189, %v188
    %v191 = vld [vmem:[#allocation8] sm:$0xf]
    %v192 = vld [vmem:[#allocation8 + $0x4] sm:$0xf]
    %v193 = vld [vmem:[#allocation8 + $0x8] sm:$0xf]
    %v194 = vld [vmem:[#allocation8 + $0xc] sm:$0xf]
    %v195 = vld [vmem:[#allocation8 + $0x10] sm:$0xf]
    %v196 = vld [vmem:[#allocation8 + $0x14] sm:$0xf]
    %v197 = vld [vmem:[#allocation8 + $0x18] sm:$0xf]
    %v198 = vld [vmem:[#allocation8 + $0x1c] sm:$0xf]
    %v199 = vld [vmem:[#allocation8 + $0x20] sm:$0xf]
    %v200 = vld [vmem:[#allocation8 + $0x24] sm:$0xf]
    %v201 = vld [vmem:[#allocation8 + $0x28] sm:$0xf]
    %v202 = vld [vmem:[#allocation8 + $0x2c] sm:$0xf]
    %v203 = vld [vmem:[#allocation8 + $0x30] sm:$0xf]
    %v204 = vld [vmem:[#allocation8 + $0x34] sm:$0xf]
    %v205 = vld [vmem:[#allocation8 + $0x38] sm:$0xf]
    %v206 = vld [vmem:[#allocation8 + $0x3c] sm:$0xf]
    %v207 = vld [vmem:[#allocation10] sm:$0x1]
    %v209 = vlaneseq
    %v210 = vshrl.u32 %v209, 7
    %v211 = vsub.s32 0, %v210
    %v212 = vrot.slane %v207, %v211
    %v230 = vunpack.c.l.b16 %v191
    %v231 = vunpack.c.l.b16 %v192
    %v232 = vunpack.c.l.b16 %v193
    %v233 = vunpack.c.l.b16 %v194
    %v234 = vunpack.c.l.b16 %v195
    %v235 = vunpack.c.l.b16 %v196
    %v236 = vunpack.c.l.b16 %v197
    %v237 = vunpack.c.l.b16 %v198
    %v238 = vunpack.c.l.b16 %v199
    %v239 = vunpack.c.l.b16 %v200
    %v240 = vunpack.c.l.b16 %v201
    %v241 = vunpack.c.l.b16 %v202
    %v242 = vunpack.c.l.b16 %v203
    %v243 = vunpack.c.l.b16 %v204
    %v244 = vunpack.c.l.b16 %v205
    %v245 = vunpack.c.l.b16 %v206
    %v246 = vpack.c.b16 %v231, %v230
    %v247 = vpack.c.b16 %v233, %v232
    %v248 = vpack.c.b16 %v235, %v234
    %v249 = vpack.c.b16 %v237, %v236
    %v250 = vpack.c.b16 %v239, %v238
    %v251 = vpack.c.b16 %v241, %v240
    %v252 = vpack.c.b16 %v243, %v242
    %v253 = vpack.c.b16 %v245, %v244
    %262 = vmatprep.subr.bf16.mxu0 0
    %263 = vmatpush1.bf16.msra.mxu0 %v246
    %264 = vmatprep.subr.bf16.mxu0 0
    %265 = vmatpush1.bf16.msra.mxu0 %v247
    %266 = vmatprep.subr.bf16.mxu0 0
    %267 = vmatpush1.bf16.msra.mxu0 %v248
    %268 = vmatprep.subr.bf16.mxu0 0
    %269 = vmatpush1.bf16.msra.mxu0 %v249
    %270 = vmatprep.subr.bf16.mxu0 0
    %271 = vmatpush1.bf16.msra.mxu0 %v250
    %272 = vmatprep.subr.bf16.mxu0 0
    %273 = vmatpush1.bf16.msra.mxu0 %v251
    %274 = vmatprep.subr.bf16.mxu0 0
    %275 = vmatpush1.bf16.msra.mxu0 %v252
    %276 = vmatprep.subr.bf16.mxu0 0
    %277 = vmatpush1.bf16.msra.mxu0 %v253
    %278 = vmatprep.subr.bf16.mxu0 0
    %279 = vmatpush1.bf16.msra.mxu0 0
    %280 = vmatprep.subr.bf16.mxu0 0
    %281 = vmatpush1.bf16.msra.mxu0 0
    %282 = vmatprep.subr.bf16.mxu0 0
    %283 = vmatpush1.bf16.msra.mxu0 0
    %284 = vmatprep.subr.bf16.mxu0 0
    %285 = vmatpush1.bf16.msra.mxu0 0
    %286 = vmatprep.subr.bf16.mxu0 0
    %287 = vmatpush1.bf16.msra.mxu0 0
    %288 = vmatprep.subr.bf16.mxu0 0
    %289 = vmatpush1.bf16.msra.mxu0 0
    %290 = vmatprep.subr.bf16.mxu0 0
    %291 = vmatpush1.bf16.msra.mxu0 0
    %292 = vmatprep.subr.bf16.mxu0 0
    %293 = vmatpush1.bf16.msra.mxu0 0
    %294 = vmatprep.mubr.bf16.mxu0 0
    %295 = vmatmul.mubr.bf16.gmra.mrb[0].mxu0 %v190
    %v296 = vpop.f32.mrb[0].mxu0
    %v297 = vadd.f32 %v212, %v296
    %v298 = vpop.f32.mrb[0].mxu0
    %v299 = vpop.f32.mrb[0].mxu0
    %v300 = vadd.f32 %v212, %v299
    %v301 = vpop.f32.mrb[0].mxu0
    %302 = vdwg.mxu0
    %v303 = vmax.f32 %v297, 0.0
    %v304 = vmax.f32 %v300, 0.0
    %v305 = vpack.c.bf16 %v304, %v303
    %v306 = vld [vmem:[#allocation11] sm:$0xf]
    %v307 = vld [vmem:[#allocation11 + $0x4] sm:$0xf]
    %v308 = vld [vmem:[#allocation11 + $0x8] sm:$0xf]
    %v309 = vld [vmem:[#allocation11 + $0xc] sm:$0xf]
    %v310 = vld [vmem:[#allocation11 + $0x10] sm:$0xf]
    %v311 = vld [vmem:[#allocation11 + $0x14] sm:$0xf]
    %v312 = vld [vmem:[#allocation11 + $0x18] sm:$0xf]
    %v313 = vld [vmem:[#allocation11 + $0x1c] sm:$0xf]
    %v314 = vld [vmem:[#allocation11 + $0x20] sm:$0xf]
    %v315 = vld [vmem:[#allocation11 + $0x24] sm:$0xf]
    %v316 = vld [vmem:[#allocation11 + $0x28] sm:$0xf]
    %v317 = vld [vmem:[#allocation11 + $0x2c] sm:$0xf]
    %v318 = vld [vmem:[#allocation11 + $0x30] sm:$0xf]
    %v319 = vld [vmem:[#allocation11 + $0x34] sm:$0xf]
    %v320 = vld [vmem:[#allocation11 + $0x38] sm:$0xf]
    %v321 = vld [vmem:[#allocation11 + $0x3c] sm:$0xf]
    %v322 = vld [vmem:[#allocation13] sm:$0x1]
    %v324 = vlaneseq
    %v325 = vshrl.u32 %v324, 7
    %v326 = vsub.s32 0, %v325
    %v327 = vrot.slane %v322, %v326
    %v345 = vunpack.c.l.b16 %v306
    %v346 = vunpack.c.l.b16 %v307
    %v347 = vunpack.c.l.b16 %v308
    %v348 = vunpack.c.l.b16 %v309
    %v349 = vunpack.c.l.b16 %v310
    %v350 = vunpack.c.l.b16 %v311
    %v351 = vunpack.c.l.b16 %v312
    %v352 = vunpack.c.l.b16 %v313
    %v353 = vunpack.c.l.b16 %v314
    %v354 = vunpack.c.l.b16 %v315
    %v355 = vunpack.c.l.b16 %v316
    %v356 = vunpack.c.l.b16 %v317
    %v357 = vunpack.c.l.b16 %v318
    %v358 = vunpack.c.l.b16 %v319
    %v359 = vunpack.c.l.b16 %v320
    %v360 = vunpack.c.l.b16 %v321
    %v361 = vpack.c.b16 %v346, %v345
    %v362 = vpack.c.b16 %v348, %v347
    %v363 = vpack.c.b16 %v350, %v349
    %v364 = vpack.c.b16 %v352, %v351
    %v365 = vpack.c.b16 %v354, %v353
    %v366 = vpack.c.b16 %v356, %v355
    %v367 = vpack.c.b16 %v358, %v357
    %v368 = vpack.c.b16 %v360, %v359
    %377 = vmatprep.subr.bf16.mxu0 0
    %378 = vmatpush1.bf16.msra.mxu0 %v361
    %379 = vmatprep.subr.bf16.mxu0 0
    %380 = vmatpush1.bf16.msra.mxu0 %v362
    %381 = vmatprep.subr.bf16.mxu0 0
    %382 = vmatpush1.bf16.msra.mxu0 %v363
    %383 = vmatprep.subr.bf16.mxu0 0
    %384 = vmatpush1.bf16.msra.mxu0 %v364
    %385 = vmatprep.subr.bf16.mxu0 0
    %386 = vmatpush1.bf16.msra.mxu0 %v365
    %387 = vmatprep.subr.bf16.mxu0 0
    %388 = vmatpush1.bf16.msra.mxu0 %v366
    %389 = vmatprep.subr.bf16.mxu0 0
    %390 = vmatpush1.bf16.msra.mxu0 %v367
    %391 = vmatprep.subr.bf16.mxu0 0
    %392 = vmatpush1.bf16.msra.mxu0 %v368
    %393 = vmatprep.subr.bf16.mxu0 0
    %394 = vmatpush1.bf16.msra.mxu0 0
    %395 = vmatprep.subr.bf16.mxu0 0
    %396 = vmatpush1.bf16.msra.mxu0 0
    %397 = vmatprep.subr.bf16.mxu0 0
    %398 = vmatpush1.bf16.msra.mxu0 0
    %399 = vmatprep.subr.bf16.mxu0 0
    %400 = vmatpush1.bf16.msra.mxu0 0
    %401 = vmatprep.subr.bf16.mxu0 0
    %402 = vmatpush1.bf16.msra.mxu0 0
    %403 = vmatprep.subr.bf16.mxu0 0
    %404 = vmatpush1.bf16.msra.mxu0 0
    %405 = vmatprep.subr.bf16.mxu0 0
    %406 = vmatpush1.bf16.msra.mxu0 0
    %407 = vmatprep.subr.bf16.mxu0 0
    %408 = vmatpush1.bf16.msra.mxu0 0
    %409 = vmatprep.mubr.bf16.mxu0 0
    %410 = vmatmul.mubr.bf16.gmra.mrb[0].mxu0 %v305
    %v411 = vpop.f32.mrb[0].mxu0
    %v412 = vadd.f32 %v327, %v411
    %v413 = vpop.f32.mrb[0].mxu0
    %v414 = vpop.f32.mrb[0].mxu0
    %v415 = vadd.f32 %v327, %v414
    %v416 = vpop.f32.mrb[0].mxu0
    %417 = vdwg.mxu0
    %418 = vst [vmem:[#allocation14] sm:$0xff] %v412
    %419 = vst [vmem:[#allocation14 + $0x8] sm:$0xff] %v415
    // Predicated region
    $region58: #{tpu_custom_call.1} parent=1 // pred_check
      _
    $region59: #{tpu_custom_call.1} parent=1 // pred_check_branch
      %421 = sbr.rel (0) target = $region61
    $region60: #{tpu_custom_call.1} parent=1 // pred_region
      %s423 = ssub.s32 256, 256
      %424 = vsyncadd [#allocation4], %s423
      %s425 = sshll.u32 [#allocation14], 4
      %s426 = int_to_ptr.vmem [resolvable:$true] %s425
      %431 = dma.vmem_to_hbm [thread:$0]  %s426, 256, %s7, [#allocation4], 128, 128, 8
    $region61: #{tpu_custom_call.1} parent=1 // pred_fallthru
      _
    // Predicated region
    $region62: #{tpu_custom_call.1} parent=1 // pred_check
      _
    $region63: #{tpu_custom_call.1} parent=1 // pred_check_branch
      %433 = sbr.rel (0) target = $region65
    $region64: #{tpu_custom_call.1} parent=1 // pred_region
      %434 = dma.done [#allocation4], 256
    $region65: #{tpu_custom_call.1} parent=1 // pred_fallthru
      _
    %435 = vsyncpa [#allocation3], 1
    %436 = vsyncpa [#allocation6], 1
    %437 = vsyncpa [#allocation9], 1
    %438 = vsyncpa [#allocation12], 1
    %439 = vsyncpa [#allocation4], 1

</llo_original>
